<compile_context>
chip_gen: v7x
topology: tpu7x:2x2x1
jax: 0.10.0
libtpu: 0.0.40
codegen_flags: <defaults>
</compile_context>

<pallas_src>
import functools
import math

import jax
import jax.numpy as jnp
from jax.experimental import pallas as pl
from jax.experimental.pallas import tpu as pltpu

F32 = jnp.float32
LANES = 128
TM_MAX = 8192          # per-step element tile (lane axis); 4 MiB f32 hidden tile @ H=128


# ----------------------------------------------------------------------------
# Fused Pallas kernel
# ----------------------------------------------------------------------------


def _lns_kernel(scalars_ref, x_ref, w2_ref, b2_ref, w3_ref, o_ref):
    # scalars_ref (SMEM, (4,)): [|w1|, |b1|, scale, offset]
    w1a = scalars_ref[0]
    b1a = scalars_ref[1]
    scale = scalars_ref[2]
    offset = scalars_ref[3]

    w2a = jnp.abs(w2_ref[...])              # (H, 1)
    b2a = jnp.abs(b2_ref[...])              # (H, 1)
    w3a = jnp.abs(w3_ref[...])              # (1, H)  lane-dense

    y = w1a * x_ref[...] + b1a              # (1, TM)
    t = y * w2a + b2a                       # (H, TM)  broadcast
    # sigmoid(t) == 0.5*tanh(0.5*t)+0.5 : one EUP push instead of exp + reciprocal.
    h = 0.5 * jnp.tanh(0.5 * t) + 0.5       # (H, TM)
    # H-reduction on the MXU (K = H contraction), result stays lane-dense.
    z = jnp.dot(w3a, h, preferred_element_type=jnp.float32)   # (1, TM)
    # normed = slope*(net(x)-net(0))/(net(1)-net(0)) + intercept, with |b3| cancelled
    # and the affine normalization folded into (scale, offset).
    o_ref[...] = (y + z) * scale + offset


def learned_noise_schedule_forward(params, x, *, log_snr_max, log_snr_min,
                                   frac_gradient=1.0):
    """Forward pass of learned_noise_schedule.  x: arbitrary shape."""
    del frac_gradient  # forward value is unaffected (gradient-only rescaling)
    slope = float(log_snr_min - log_snr_max)
    intercept = float(log_snr_max)

    orig_shape = x.shape
    xf = x.reshape(-1).astype(F32)
    m = xf.shape[0]

    # Tile / padding choices: lane-dense (1, TM) blocks, TM a multiple of 128.
    mp128 = ((m + LANES - 1) // LANES) * LANES
    tm = min(TM_MAX, mp128)
    mp = ((mp128 + tm - 1) // tm) * tm
    if mp != m:
        xf = jnp.pad(xf, (0, mp - m))        # zero pad: y=|b1| there, finite, sliced off
    x2d = xf.reshape(1, mp)
    grid = (mp // tm,)

    hidden = params['w2'].shape[0]

    # --- data-independent endpoint normalization (net(0), net(1)) --------------
    # net(v) = |w1|v+|b1| + |b3| + sum_i |w3_i| sigmoid((|w1|v+|b1|)|w2_i|+|b2_i|);
    # |b3| cancels in slope*(net(x)-net(0))/(net(1)-net(0)), so it never enters the
    # kernel.  These are O(H) scalar computations on params only.
    w1a = jnp.abs(params['w1']).reshape(())
    b1a = jnp.abs(params['b1']).reshape(())
    w2a = jnp.abs(params['w2']).reshape(-1)
    b2a = jnp.abs(params['b2']).reshape(-1)
    w3a = jnp.abs(params['w3']).reshape(-1)

    def g(v):
        y = w1a * v + b1a
        return y + jnp.sum(w3a * jax.nn.sigmoid(y * w2a + b2a))

    g0 = g(jnp.float32(0.0))
    g1 = g(jnp.float32(1.0))
    scale = slope / (g1 - g0)
    offset = intercept - g0 * scale
    scalars = jnp.stack([w1a, b1a, scale, offset]).astype(F32)

    cost = pl.CostEstimate(flops=4 * hidden * mp,
                           transcendentals=hidden * mp,
                           bytes_accessed=8 * mp)

    out = pl.pallas_call(
        _lns_kernel,
        out_shape=jax.ShapeDtypeStruct((1, mp), F32),
        grid_spec=pltpu.PrefetchScalarGridSpec(
            num_scalar_prefetch=1,
            grid=grid,
            in_specs=[
                pl.BlockSpec((1, tm), lambda i, s: (0, i)),       # x  (lane-dense)
                pl.BlockSpec((hidden, 1), lambda i, s: (0, 0)),   # w2
                pl.BlockSpec((hidden, 1), lambda i, s: (0, 0)),   # b2
                pl.BlockSpec((1, hidden), lambda i, s: (0, 0)),   # w3 (lane-dense)
            ],
            out_specs=pl.BlockSpec((1, tm), lambda i, s: (0, i)),
        ),
        compiler_params=pltpu.CompilerParams(
            dimension_semantics=("parallel",),        # shard over 2 TCs on v7x
            vmem_limit_bytes=32 * 1024 * 1024),
        cost_estimate=cost,
    )(
        scalars,
        x2d,
        params['w2'].reshape(hidden, 1).astype(F32),
        params['b2'].reshape(hidden, 1).astype(F32),
        params['w3'].reshape(1, hidden).astype(F32),
    )
    return out.reshape(-1)[:m].reshape(orig_shape)


# ----------------------------------------------------------------------------
# Pure-JAX reference (mirrors the PyTorch module literally) for validation
# ----------------------------------------------------------------------------


def _reference(params, x, *, log_snr_max, log_snr_min, frac_gradient=1.0):
    slope = log_snr_min - log_snr_max
    intercept = log_snr_max

    def mono_linear(v, w, b):
        return v @ jnp.abs(w).T + jnp.abs(b)

    def net(v):
        v1 = v[..., None]                                        # '... -> ... 1'
        y = mono_linear(v1, params['w1'], params['b1'])          # (..., 1)
        h = jax.nn.sigmoid(mono_linear(y, params['w2'], params['b2']))
        z = mono_linear(h, params['w3'], params['b3'])           # (..., 1)
        return (z + y)[..., 0]                                   # residual, '... 1 -> ...'

    out_zero = net(jnp.zeros_like(x))
    out_one = net(jnp.ones_like(x))
    nx = net(x)
    normed = slope * ((nx - out_zero) / (out_one - out_zero)) + intercept
    return normed * frac_gradient + normed * (1.0 - frac_gradient)


# ----------------------------------------------------------------------------
# Main
# ----------------------------------------------------------------------------

if __name__ == "__main__":
    hidden_dim = 128
    B, T = 2, 128
    log_snr_max, log_snr_min = 10.0, -10.0
    frac_gradient = 1.0

    key = jax.random.PRNGKey(0)
    ks = jax.random.split(key, 7)
    bound3 = 1.0 / math.sqrt(hidden_dim)
    params = {
        # nn.Linear-style uniform init (fan_in = 1 for the 1->1 and 1->H layers)
        'w1': jax.random.uniform(ks[0], (1, 1), F32, -1.0, 1.0),
        'b1': jax.random.uniform(ks[1], (1,), F32, -1.0, 1.0),
        'w2': jax.random.uniform(ks[2], (hidden_dim, 1), F32, -1.0, 1.0),
        'b2': jax.random.uniform(ks[3], (hidden_dim,), F32, -1.0, 1.0),
        'w3': jax.random.uniform(ks[4], (1, hidden_dim), F32, -bound3, bound3),
        'b3': jax.random.uniform(ks[5], (1,), F32, -bound3, bound3),
    }

    x = jax.random.uniform(ks[6], (B, T), F32, 0.0, 1.0)

    out = learned_noise_schedule_forward(
        params, x, log_snr_max=log_snr_max, log_snr_min=log_snr_min,
        frac_gradient=frac_gradient)
    out = jax.block_until_ready(out)

    ref = _reference(params, x, log_snr_max=log_snr_max, log_snr_min=log_snr_min,
                     frac_gradient=frac_gradient)

    assert out.shape == x.shape, out.shape
    assert bool(jnp.all(jnp.isfinite(out)))
    assert bool(jnp.allclose(out, ref, rtol=1e-2, atol=1e-2)), \
        float(jnp.max(jnp.abs(out - ref)))
    print("KERNEL_OK")
</pallas_src>

<mosaic_0001>
module attributes {stable_mosaic.version = 11 : i64} {
  func.func @_lns_kernel(%arg0: i32, %arg1: memref<4xf32, #tpu.memory_space<smem>>, %arg2: memref<1x256xf32, #tpu.memory_space<vmem>>, %arg3: memref<128x1xf32, #tpu.memory_space<vmem>>, %arg4: memref<128x1xf32, #tpu.memory_space<vmem>>, %arg5: memref<1x128xf32, #tpu.memory_space<vmem>>, %arg6: memref<1x256xf32, #tpu.memory_space<vmem>>) attributes {dimension_semantics = [#tpu.dimension_semantics<parallel>], iteration_bounds = array<i64: 1>, scalar_prefetch = 1 : i64, scratch_operands = 0 : i64, tpu.core_type = #tpu.core_type<tc>, window_params = [{transform_indices = @transform_0, window_bounds = array<i64: 1, 256>}, {pipeline_mode = #tpu.pipeline_mode<synchronous>, transform_indices = @transform_1, window_bounds = array<i64: 128, 1>}, {pipeline_mode = #tpu.pipeline_mode<synchronous>, transform_indices = @transform_2, window_bounds = array<i64: 128, 1>}, {pipeline_mode = #tpu.pipeline_mode<synchronous>, transform_indices = @transform_3, window_bounds = array<i64: 1, 128>}, {transform_indices = @transform_4, window_bounds = array<i64: 1, 256>}]} {
    %c0 = arith.constant 0 : index
    %0 = memref.load %arg1[%c0] : memref<4xf32, #tpu.memory_space<smem>>
    %c1 = arith.constant 1 : index
    %1 = memref.load %arg1[%c1] : memref<4xf32, #tpu.memory_space<smem>>
    %c2 = arith.constant 2 : index
    %2 = memref.load %arg1[%c2] : memref<4xf32, #tpu.memory_space<smem>>
    %c3 = arith.constant 3 : index
    %3 = memref.load %arg1[%c3] : memref<4xf32, #tpu.memory_space<smem>>
    %c0_0 = arith.constant 0 : index
    %c0_1 = arith.constant 0 : index
    %4 = vector.load %arg3[%c0_0, %c0_1] : memref<128x1xf32, #tpu.memory_space<vmem>>, vector<128x1xf32>
    %5 = math.absf %4 : vector<128x1xf32>
    %c0_2 = arith.constant 0 : index
    %c0_3 = arith.constant 0 : index
    %6 = vector.load %arg4[%c0_2, %c0_3] : memref<128x1xf32, #tpu.memory_space<vmem>>, vector<128x1xf32>
    %7 = math.absf %6 : vector<128x1xf32>
    %c0_4 = arith.constant 0 : index
    %c0_5 = arith.constant 0 : index
    %8 = vector.load %arg5[%c0_4, %c0_5] : memref<1x128xf32, #tpu.memory_space<vmem>>, vector<1x128xf32>
    %9 = math.absf %8 : vector<1x128xf32>
    %c0_6 = arith.constant 0 : index
    %c0_7 = arith.constant 0 : index
    %10 = vector.load %arg2[%c0_6, %c0_7] : memref<1x256xf32, #tpu.memory_space<vmem>>, vector<1x256xf32>
    %11 = vector.broadcast %0 : f32 to vector<1x256xf32>
    %12 = arith.mulf %11, %10 : vector<1x256xf32>
    %13 = vector.broadcast %1 : f32 to vector<1x256xf32>
    %14 = arith.addf %12, %13 : vector<1x256xf32>
    %15 = vector.broadcast %14 : vector<1x256xf32> to vector<128x256xf32>
    %16 = vector.broadcast %5 : vector<128x1xf32> to vector<128x256xf32>
    %17 = arith.mulf %15, %16 : vector<128x256xf32>
    %18 = vector.broadcast %7 : vector<128x1xf32> to vector<128x256xf32>
    %19 = arith.addf %17, %18 : vector<128x256xf32>
    %cst = arith.constant 5.000000e-01 : f32
    %20 = vector.broadcast %cst : f32 to vector<128x256xf32>
    %21 = arith.mulf %20, %19 : vector<128x256xf32>
    %22 = math.tanh %21 : vector<128x256xf32>
    %cst_8 = arith.constant 5.000000e-01 : f32
    %23 = vector.broadcast %cst_8 : f32 to vector<128x256xf32>
    %24 = arith.mulf %23, %22 : vector<128x256xf32>
    %cst_9 = arith.constant 5.000000e-01 : f32
    %25 = vector.broadcast %cst_9 : f32 to vector<128x256xf32>
    %26 = arith.addf %24, %25 : vector<128x256xf32>
    %cst_10 = arith.constant dense<0.000000e+00> : vector<1x256xf32>
    %27 = tpu.matmul %9, %26, %cst_10 {dimension_numbers = #tpu.dot_dimension_numbers<[1], [0], [0], [1], [0, 0, 1, 1], [], []>} : vector<1x128xf32>, vector<128x256xf32>, vector<1x256xf32> -> vector<1x256xf32>
    %28 = arith.addf %14, %27 : vector<1x256xf32>
    %29 = vector.broadcast %2 : f32 to vector<1x256xf32>
    %30 = arith.mulf %28, %29 : vector<1x256xf32>
    %31 = vector.broadcast %3 : f32 to vector<1x256xf32>
    %32 = arith.addf %30, %31 : vector<1x256xf32>
    %c0_11 = arith.constant 0 : index
    %c0_12 = arith.constant 0 : index
    %33 = vector.load %arg6[%c0_11, %c0_12] : memref<1x256xf32, #tpu.memory_space<vmem>>, vector<1x256xf32>
    tpu.vector_store %arg6[%c0_11, %c0_12], %32 {strides = array<i32>} : memref<1x256xf32, #tpu.memory_space<vmem>>, vector<1x256xf32>,
    return
  }
  func.func @transform_0(%arg0: i32, %arg1: memref<4xf32, #tpu.memory_space<smem>>) -> (i32, i32) {
    %c0_i32 = arith.constant 0 : i32
    %c0_i32_0 = arith.constant 0 : i32
    return %c0_i32, %arg0 : i32, i32
  }
  func.func @transform_1(%arg0: i32, %arg1: memref<4xf32, #tpu.memory_space<smem>>) -> (i32, i32) {
    %c0_i32 = arith.constant 0 : i32
    %c0_i32_0 = arith.constant 0 : i32
    %c0_i32_1 = arith.constant 0 : i32
    return %c0_i32, %c0_i32_0 : i32, i32
  }
  func.func @transform_2(%arg0: i32, %arg1: memref<4xf32, #tpu.memory_space<smem>>) -> (i32, i32) {
    %c0_i32 = arith.constant 0 : i32
    %c0_i32_0 = arith.constant 0 : i32
    %c0_i32_1 = arith.constant 0 : i32
    return %c0_i32, %c0_i32_0 : i32, i32
  }
  func.func @transform_3(%arg0: i32, %arg1: memref<4xf32, #tpu.memory_space<smem>>) -> (i32, i32) {
    %c0_i32 = arith.constant 0 : i32
    %c0_i32_0 = arith.constant 0 : i32
    %c0_i32_1 = arith.constant 0 : i32
    return %c0_i32, %c0_i32_0 : i32, i32
  }
  func.func @transform_4(%arg0: i32, %arg1: memref<4xf32, #tpu.memory_space<smem>>) -> (i32, i32) {
    %c0_i32 = arith.constant 0 : i32
    %c0_i32_0 = arith.constant 0 : i32
    return %c0_i32, %arg0 : i32, i32
  }
}

</mosaic_0001>

<llo_original>
// kernel: tpu_custom_call.1
$region0: #{tpu_custom_call.1}
  #allocation0 [shape = 'u32[]', space=smem, size = 0x4, offset = 0x4, fixed_abs, tag = 'smem constant byte address 0x4 - core index']
  #allocation1 [shape = 'u32[144,128]{1,0:T(1,128)}', space=vmem, size = 0x12000, scoped, tag = 'internal scratch']
  #allocation2 [shape = 's32[1]{0}', space=sflag, size = 0x4, scoped, tag = 'scoped memory for tpu_custom_call.1']
  #allocation3 [shape = 'u8[512]{0}', space=smem, size = 0x200, scoped, tag = 'prefetched SMEM operand 0']
  %s0 = inlined_call_operand.vmem [shape: f32[4], index: 0, kind: input, shape index: {}]
  %s1 = inlined_call_operand.vmem [shape: f32[1,256], index: 1, kind: input, shape index: {}]
  %s2 = inlined_call_operand.vmem [shape: f32[128,1], index: 2, kind: input, shape index: {}]
  %s3 = inlined_call_operand.vmem [shape: f32[128,1], index: 3, kind: input, shape index: {}]
  %s4 = inlined_call_operand.vmem [shape: f32[1,128], index: 4, kind: input, shape index: {}]
  %s5 = inlined_call_operand.hbm [shape: f32[1,256], index: 5, kind: output, shape index: {}]
  %s6 = sld [smem:[#allocation0]]
  $region26: #{tpu_custom_call.1} parent=0
    _
  %s8 = ssub.s32 1, %s6
  %s9 = scalar_select 0, %s8, %s6
  %s10 = sshll.u32 %s0, 4
  %s11 = int_to_ptr.vmem [resolvable:$true] %s10
  %13 = dma.vmem_to_smem %s11, 16, [#allocation3], [#allocation2]
  %14 = dma.done [#allocation2], 16
  %15 = sfence
  $region1: #{tpu_custom_call.1} parent=0
    #allocation4 [shape = 'u8[1024]{0}', space=vmem, size = 0x400, scoped, tag = 'output window, operand 0, single buffered']
    #allocation5 [shape = 's32[1]{0}', space=sflag, size = 0x4, scoped, tag = 'scoped memory for tpu_custom_call.1']
    %16 = vsyncpa [#allocation5], 0
    // Predicated region
    $region2: #{tpu_custom_call.1} parent=1 // pred_check
      _
    $region3: #{tpu_custom_call.1} parent=1 // pred_check_branch
      %18 = sbr.rel (0) target = $region5
    $region4: #{tpu_custom_call.1} parent=1 // pred_region
      _
    $region5: #{tpu_custom_call.1} parent=1 // pred_fallthru
      _
    // Predicated region
    $region6: #{tpu_custom_call.1} parent=1 // pred_check
      _
    $region7: #{tpu_custom_call.1} parent=1 // pred_check_branch
      %20 = sbr.rel (0) target = $region9
    $region8: #{tpu_custom_call.1} parent=1 // pred_region
      _
    $region9: #{tpu_custom_call.1} parent=1 // pred_fallthru
      _
    // Predicated region
    $region10: #{tpu_custom_call.1} parent=1 // pred_check
      _
    $region11: #{tpu_custom_call.1} parent=1 // pred_check_branch
      %22 = sbr.rel (0) target = $region13
    $region12: #{tpu_custom_call.1} parent=1 // pred_region
      _
    $region13: #{tpu_custom_call.1} parent=1 // pred_fallthru
      _
    // Predicated region
    $region14: #{tpu_custom_call.1} parent=1 // pred_check
      _
    $region15: #{tpu_custom_call.1} parent=1 // pred_check_branch
      %24 = sbr.rel (0) target = $region17
    $region16: #{tpu_custom_call.1} parent=1 // pred_region
      _
    $region17: #{tpu_custom_call.1} parent=1 // pred_fallthru
      _
    %s25 = sld [smem:[#allocation3]]
    %s26 = sld [smem:[#allocation3 + $0x1]]
    %s27 = sld [smem:[#allocation3 + $0x2]]
    %s28 = sld [smem:[#allocation3 + $0x3]]
    %v29 = vld [vmem:[%s2] sm:$0xff]
    %v30 = vld [vmem:[%s2 + $0x8] sm:$0xff]
    %v31 = vld [vmem:[%s2 + $0x10] sm:$0xff]
    %v32 = vld [vmem:[%s2 + $0x18] sm:$0xff]
    %v33 = vld [vmem:[%s2 + $0x20] sm:$0xff]
    %v34 = vld [vmem:[%s2 + $0x28] sm:$0xff]
    %v35 = vld [vmem:[%s2 + $0x30] sm:$0xff]
    %v36 = vld [vmem:[%s2 + $0x38] sm:$0xff]
    %v37 = vld [vmem:[%s2 + $0x40] sm:$0xff]
    %v38 = vld [vmem:[%s2 + $0x48] sm:$0xff]
    %v39 = vld [vmem:[%s2 + $0x50] sm:$0xff]
    %v40 = vld [vmem:[%s2 + $0x58] sm:$0xff]
    %v41 = vld [vmem:[%s2 + $0x60] sm:$0xff]
    %v42 = vld [vmem:[%s2 + $0x68] sm:$0xff]
    %v43 = vld [vmem:[%s2 + $0x70] sm:$0xff]
    %v44 = vld [vmem:[%s2 + $0x78] sm:$0xff]
    %v45 = vand.u32 2147483647, %v29
    %v46 = vand.u32 2147483647, %v30
    %v47 = vand.u32 2147483647, %v31
    %v48 = vand.u32 2147483647, %v32
    %v49 = vand.u32 2147483647, %v33
    %v50 = vand.u32 2147483647, %v34
    %v51 = vand.u32 2147483647, %v35
    %v52 = vand.u32 2147483647, %v36
    %v53 = vand.u32 2147483647, %v37
    %v54 = vand.u32 2147483647, %v38
    %v55 = vand.u32 2147483647, %v39
    %v56 = vand.u32 2147483647, %v40
    %v57 = vand.u32 2147483647, %v41
    %v58 = vand.u32 2147483647, %v42
    %v59 = vand.u32 2147483647, %v43
    %v60 = vand.u32 2147483647, %v44
    %v61 = vld [vmem:[%s3] sm:$0xff]
    %v62 = vld [vmem:[%s3 + $0x8] sm:$0xff]
    %v63 = vld [vmem:[%s3 + $0x10] sm:$0xff]
    %v64 = vld [vmem:[%s3 + $0x18] sm:$0xff]
    %v65 = vld [vmem:[%s3 + $0x20] sm:$0xff]
    %v66 = vld [vmem:[%s3 + $0x28] sm:$0xff]
    %v67 = vld [vmem:[%s3 + $0x30] sm:$0xff]
    %v68 = vld [vmem:[%s3 + $0x38] sm:$0xff]
    %v69 = vld [vmem:[%s3 + $0x40] sm:$0xff]
    %v70 = vld [vmem:[%s3 + $0x48] sm:$0xff]
    %v71 = vld [vmem:[%s3 + $0x50] sm:$0xff]
    %v72 = vld [vmem:[%s3 + $0x58] sm:$0xff]
    %v73 = vld [vmem:[%s3 + $0x60] sm:$0xff]
    %v74 = vld [vmem:[%s3 + $0x68] sm:$0xff]
    %v75 = vld [vmem:[%s3 + $0x70] sm:$0xff]
    %v76 = vld [vmem:[%s3 + $0x78] sm:$0xff]
    %v77 = vand.u32 2147483647, %v61
    %v78 = vand.u32 2147483647, %v62
    %v79 = vand.u32 2147483647, %v63
    %v80 = vand.u32 2147483647, %v64
    %v81 = vand.u32 2147483647, %v65
    %v82 = vand.u32 2147483647, %v66
    %v83 = vand.u32 2147483647, %v67
    %v84 = vand.u32 2147483647, %v68
    %v85 = vand.u32 2147483647, %v69
    %v86 = vand.u32 2147483647, %v70
    %v87 = vand.u32 2147483647, %v71
    %v88 = vand.u32 2147483647, %v72
    %v89 = vand.u32 2147483647, %v73
    %v90 = vand.u32 2147483647, %v74
    %v91 = vand.u32 2147483647, %v75
    %v92 = vand.u32 2147483647, %v76
    %v93 = vld [vmem:[%s4] sm:$0x1]
    %v94 = vand.u32 2147483647, %v93
    %v95 = vld [vmem:[%s1] sm:$0x3]
    %v96 = vstv %s25
    %v97 = vmul.f32 %v96, %v95
    %v98 = vstv %s26
    %v99 = vadd.f32 %v97, %v98
    %v101 = vlaneseq
    %v102 = vshrl.u32 %v101, 7
    %v103 = vsub.s32 0, %v102
    %v104 = vrot.slane %v99, %v103
    %v105 = vlaneseq
    %v106 = vshrl.u32 %v105, 7
    %v107 = vsub.s32 1, %v106
    %v108 = vrot.slane %v99, %v107
    %112 = vset.pattern.permute.xlu0 0
    %113 = vperm.xlu0 %112, %v45
    %v114 = vpop.permute.xlu0 %113
    %117 = vset.pattern.permute.xlu0 0
    %118 = vperm.xlu0 %117, %v46
    %v119 = vpop.permute.xlu0 %118
    %122 = vset.pattern.permute.xlu0 0
    %123 = vperm.xlu0 %122, %v47
    %v124 = vpop.permute.xlu0 %123
    %127 = vset.pattern.permute.xlu0 0
    %128 = vperm.xlu0 %127, %v48
    %v129 = vpop.permute.xlu0 %128
    %132 = vset.pattern.permute.xlu0 0
    %133 = vperm.xlu0 %132, %v49
    %v134 = vpop.permute.xlu0 %133
    %137 = vset.pattern.permute.xlu0 0
    %138 = vperm.xlu0 %137, %v50
    %v139 = vpop.permute.xlu0 %138
    %142 = vset.pattern.permute.xlu0 0
    %143 = vperm.xlu0 %142, %v51
    %v144 = vpop.permute.xlu0 %143
    %147 = vset.pattern.permute.xlu0 0
    %148 = vperm.xlu0 %147, %v52
    %v149 = vpop.permute.xlu0 %148
    %152 = vset.pattern.permute.xlu0 0
    %153 = vperm.xlu0 %152, %v53
    %v154 = vpop.permute.xlu0 %153
    %157 = vset.pattern.permute.xlu0 0
    %158 = vperm.xlu0 %157, %v54
    %v159 = vpop.permute.xlu0 %158
    %162 = vset.pattern.permute.xlu0 0
    %163 = vperm.xlu0 %162, %v55
    %v164 = vpop.permute.xlu0 %163
    %167 = vset.pattern.permute.xlu0 0
    %168 = vperm.xlu0 %167, %v56
    %v169 = vpop.permute.xlu0 %168
    %172 = vset.pattern.permute.xlu0 0
    %173 = vperm.xlu0 %172, %v57
    %v174 = vpop.permute.xlu0 %173
    %177 = vset.pattern.permute.xlu0 0
    %178 = vperm.xlu0 %177, %v58
    %v179 = vpop.permute.xlu0 %178
    %182 = vset.pattern.permute.xlu0 0
    %183 = vperm.xlu0 %182, %v59
    %v184 = vpop.permute.xlu0 %183
    %187 = vset.pattern.permute.xlu0 0
    %188 = vperm.xlu0 %187, %v60
    %v189 = vpop.permute.xlu0 %188
    %v191 = vmul.f32 %v104, %v114
    %v192 = vmul.f32 %v108, %v114
    %v193 = vmul.f32 %v104, %v119
    %v194 = vmul.f32 %v108, %v119
    %v195 = vmul.f32 %v104, %v124
    %v196 = vmul.f32 %v108, %v124
    %v197 = vmul.f32 %v104, %v129
    %v198 = vmul.f32 %v108, %v129
    %v199 = vmul.f32 %v104, %v134
    %v200 = vmul.f32 %v108, %v134
    %v201 = vmul.f32 %v104, %v139
    %v202 = vmul.f32 %v108, %v139
    %v203 = vmul.f32 %v104, %v144
    %v204 = vmul.f32 %v108, %v144
    %v205 = vmul.f32 %v104, %v149
    %v206 = vmul.f32 %v108, %v149
    %v207 = vmul.f32 %v104, %v154
    %v208 = vmul.f32 %v108, %v154
    %v209 = vmul.f32 %v104, %v159
    %v210 = vmul.f32 %v108, %v159
    %v211 = vmul.f32 %v104, %v164
    %v212 = vmul.f32 %v108, %v164
    %v213 = vmul.f32 %v104, %v169
    %v214 = vmul.f32 %v108, %v169
    %v215 = vmul.f32 %v104, %v174
    %v216 = vmul.f32 %v108, %v174
    %v217 = vmul.f32 %v104, %v179
    %v218 = vmul.f32 %v108, %v179
    %v219 = vmul.f32 %v104, %v184
    %v220 = vmul.f32 %v108, %v184
    %v221 = vmul.f32 %v104, %v189
    %v222 = vmul.f32 %v108, %v189
    %224 = vset.pattern.permute.xlu0 0
    %225 = vperm.xlu0 %224, %v77
    %v226 = vpop.permute.xlu0 %225
    %229 = vset.pattern.permute.xlu0 0
    %230 = vperm.xlu0 %229, %v78
    %v231 = vpop.permute.xlu0 %230
    %234 = vset.pattern.permute.xlu0 0
    %235 = vperm.xlu0 %234, %v79
    %v236 = vpop.permute.xlu0 %235
    %239 = vset.pattern.permute.xlu0 0
    %240 = vperm.xlu0 %239, %v80
    %v241 = vpop.permute.xlu0 %240
    %244 = vset.pattern.permute.xlu0 0
    %245 = vperm.xlu0 %244, %v81
    %v246 = vpop.permute.xlu0 %245
    %249 = vset.pattern.permute.xlu0 0
    %250 = vperm.xlu0 %249, %v82
    %v251 = vpop.permute.xlu0 %250
    %254 = vset.pattern.permute.xlu0 0
    %255 = vperm.xlu0 %254, %v83
    %v256 = vpop.permute.xlu0 %255
    %259 = vset.pattern.permute.xlu0 0
    %260 = vperm.xlu0 %259, %v84
    %v261 = vpop.permute.xlu0 %260
    %264 = vset.pattern.permute.xlu0 0
    %265 = vperm.xlu0 %264, %v85
    %v266 = vpop.permute.xlu0 %265
    %269 = vset.pattern.permute.xlu0 0
    %270 = vperm.xlu0 %269, %v86
    %v271 = vpop.permute.xlu0 %270
    %274 = vset.pattern.permute.xlu0 0
    %275 = vperm.xlu0 %274, %v87
    %v276 = vpop.permute.xlu0 %275
    %279 = vset.pattern.permute.xlu0 0
    %280 = vperm.xlu0 %279, %v88
    %v281 = vpop.permute.xlu0 %280
    %284 = vset.pattern.permute.xlu0 0
    %285 = vperm.xlu0 %284, %v89
    %v286 = vpop.permute.xlu0 %285
    %289 = vset.pattern.permute.xlu0 0
    %290 = vperm.xlu0 %289, %v90
    %v291 = vpop.permute.xlu0 %290
    %294 = vset.pattern.permute.xlu0 0
    %295 = vperm.xlu0 %294, %v91
    %v296 = vpop.permute.xlu0 %295
    %299 = vset.pattern.permute.xlu0 0
    %300 = vperm.xlu0 %299, %v92
    %v301 = vpop.permute.xlu0 %300
    %v303 = vadd.f32 %v191, %v226
    %v304 = vadd.f32 %v192, %v226
    %v305 = vadd.f32 %v193, %v231
    %v306 = vadd.f32 %v194, %v231
    %v307 = vadd.f32 %v195, %v236
    %v308 = vadd.f32 %v196, %v236
    %v309 = vadd.f32 %v197, %v241
    %v310 = vadd.f32 %v198, %v241
    %v311 = vadd.f32 %v199, %v246
    %v312 = vadd.f32 %v200, %v246
    %v313 = vadd.f32 %v201, %v251
    %v314 = vadd.f32 %v202, %v251
    %v315 = vadd.f32 %v203, %v256
    %v316 = vadd.f32 %v204, %v256
    %v317 = vadd.f32 %v205, %v261
    %v318 = vadd.f32 %v206, %v261
    %v319 = vadd.f32 %v207, %v266
    %v320 = vadd.f32 %v208, %v266
    %v321 = vadd.f32 %v209, %v271
    %v322 = vadd.f32 %v210, %v271
    %v323 = vadd.f32 %v211, %v276
    %v324 = vadd.f32 %v212, %v276
    %v325 = vadd.f32 %v213, %v281
    %v326 = vadd.f32 %v214, %v281
    %v327 = vadd.f32 %v215, %v286
    %v328 = vadd.f32 %v216, %v286
    %v329 = vadd.f32 %v217, %v291
    %v330 = vadd.f32 %v218, %v291
    %v331 = vadd.f32 %v219, %v296
    %v332 = vadd.f32 %v220, %v296
    %v333 = vadd.f32 %v221, %v301
    %v334 = vadd.f32 %v222, %v301
    %v335 = vmul.f32 %v303, 0.5
    %v336 = vmul.f32 %v304, 0.5
    %v337 = vmul.f32 %v305, 0.5
    %v338 = vmul.f32 %v306, 0.5
    %v339 = vmul.f32 %v307, 0.5
    %v340 = vmul.f32 %v308, 0.5
    %v341 = vmul.f32 %v309, 0.5
    %v342 = vmul.f32 %v310, 0.5
    %v343 = vmul.f32 %v311, 0.5
    %v344 = vmul.f32 %v312, 0.5
    %v345 = vmul.f32 %v313, 0.5
    %v346 = vmul.f32 %v314, 0.5
    %v347 = vmul.f32 %v315, 0.5
    %v348 = vmul.f32 %v316, 0.5
    %v349 = vmul.f32 %v317, 0.5
    %v350 = vmul.f32 %v318, 0.5
    %v351 = vmul.f32 %v319, 0.5
    %v352 = vmul.f32 %v320, 0.5
    %v353 = vmul.f32 %v321, 0.5
    %v354 = vmul.f32 %v322, 0.5
    %v355 = vmul.f32 %v323, 0.5
    %v356 = vmul.f32 %v324, 0.5
    %v357 = vmul.f32 %v325, 0.5
    %v358 = vmul.f32 %v326, 0.5
    %v359 = vmul.f32 %v327, 0.5
    %v360 = vmul.f32 %v328, 0.5
    %v361 = vmul.f32 %v329, 0.5
    %v362 = vmul.f32 %v330, 0.5
    %v363 = vmul.f32 %v331, 0.5
    %v364 = vmul.f32 %v332, 0.5
    %v365 = vmul.f32 %v333, 0.5
    %v366 = vmul.f32 %v334, 0.5
    %v367 = vtanh.pop %v335
    %v368 = vtanh.pop %v336
    %v369 = vtanh.pop %v337
    %v370 = vtanh.pop %v338
    %v371 = vtanh.pop %v339
    %v372 = vtanh.pop %v340
    %v373 = vtanh.pop %v341
    %v374 = vtanh.pop %v342
    %v375 = vtanh.pop %v343
    %v376 = vtanh.pop %v344
    %v377 = vtanh.pop %v345
    %v378 = vtanh.pop %v346
    %v379 = vtanh.pop %v347
    %v380 = vtanh.pop %v348
    %v381 = vtanh.pop %v349
    %v382 = vtanh.pop %v350
    %v383 = vtanh.pop %v351
    %v384 = vtanh.pop %v352
    %v385 = vtanh.pop %v353
    %v386 = vtanh.pop %v354
    %v387 = vtanh.pop %v355
    %v388 = vtanh.pop %v356
    %v389 = vtanh.pop %v357
    %v390 = vtanh.pop %v358
    %v391 = vtanh.pop %v359
    %v392 = vtanh.pop %v360
    %v393 = vtanh.pop %v361
    %v394 = vtanh.pop %v362
    %v395 = vtanh.pop %v363
    %v396 = vtanh.pop %v364
    %v397 = vtanh.pop %v365
    %v398 = vtanh.pop %v366
    %v399 = vmul.f32 %v367, 0.5
    %v400 = vmul.f32 %v368, 0.5
    %v401 = vmul.f32 %v369, 0.5
    %v402 = vmul.f32 %v370, 0.5
    %v403 = vmul.f32 %v371, 0.5
    %v404 = vmul.f32 %v372, 0.5
    %v405 = vmul.f32 %v373, 0.5
    %v406 = vmul.f32 %v374, 0.5
    %v407 = vmul.f32 %v375, 0.5
    %v408 = vmul.f32 %v376, 0.5
    %v409 = vmul.f32 %v377, 0.5
    %v410 = vmul.f32 %v378, 0.5
    %v411 = vmul.f32 %v379, 0.5
    %v412 = vmul.f32 %v380, 0.5
    %v413 = vmul.f32 %v381, 0.5
    %v414 = vmul.f32 %v382, 0.5
    %v415 = vmul.f32 %v383, 0.5
    %v416 = vmul.f32 %v384, 0.5
    %v417 = vmul.f32 %v385, 0.5
    %v418 = vmul.f32 %v386, 0.5
    %v419 = vmul.f32 %v387, 0.5
    %v420 = vmul.f32 %v388, 0.5
    %v421 = vmul.f32 %v389, 0.5
    %v422 = vmul.f32 %v390, 0.5
    %v423 = vmul.f32 %v391, 0.5
    %v424 = vmul.f32 %v392, 0.5
    %v425 = vmul.f32 %v393, 0.5
    %v426 = vmul.f32 %v394, 0.5
    %v427 = vmul.f32 %v395, 0.5
    %v428 = vmul.f32 %v396, 0.5
    %v429 = vmul.f32 %v397, 0.5
    %v430 = vmul.f32 %v398, 0.5
    %v431 = vadd.f32 %v399, 0.5
    %v432 = vadd.f32 %v400, 0.5
    %v433 = vadd.f32 %v401, 0.5
    %v434 = vadd.f32 %v402, 0.5
    %v435 = vadd.f32 %v403, 0.5
    %v436 = vadd.f32 %v404, 0.5
    %v437 = vadd.f32 %v405, 0.5
    %v438 = vadd.f32 %v406, 0.5
    %v439 = vadd.f32 %v407, 0.5
    %v440 = vadd.f32 %v408, 0.5
    %v441 = vadd.f32 %v409, 0.5
    %v442 = vadd.f32 %v410, 0.5
    %v443 = vadd.f32 %v411, 0.5
    %v444 = vadd.f32 %v412, 0.5
    %v445 = vadd.f32 %v413, 0.5
    %v446 = vadd.f32 %v414, 0.5
    %v447 = vadd.f32 %v415, 0.5
    %v448 = vadd.f32 %v416, 0.5
    %v449 = vadd.f32 %v417, 0.5
    %v450 = vadd.f32 %v418, 0.5
    %v451 = vadd.f32 %v419, 0.5
    %v452 = vadd.f32 %v420, 0.5
    %v453 = vadd.f32 %v421, 0.5
    %v454 = vadd.f32 %v422, 0.5
    %v455 = vadd.f32 %v423, 0.5
    %v456 = vadd.f32 %v424, 0.5
    %v457 = vadd.f32 %v425, 0.5
    %v458 = vadd.f32 %v426, 0.5
    %v459 = vadd.f32 %v427, 0.5
    %v460 = vadd.f32 %v428, 0.5
    %v461 = vadd.f32 %v429, 0.5
    %v462 = vadd.f32 %v430, 0.5
    %463 = vmatprep.subr.mxu0 %v432
    %464 = vmatpush1.msra.mxu0 %v431
    %465 = vmatprep.subr.mxu0 %v434
    %466 = vmatpush1.msra.mxu0 %v433
    %467 = vmatprep.subr.mxu0 %v436
    %468 = vmatpush1.msra.mxu0 %v435
    %469 = vmatprep.subr.mxu0 %v438
    %470 = vmatpush1.msra.mxu0 %v437
    %471 = vmatprep.subr.mxu0 %v440
    %472 = vmatpush1.msra.mxu0 %v439
    %473 = vmatprep.subr.mxu0 %v442
    %474 = vmatpush1.msra.mxu0 %v441
    %475 = vmatprep.subr.mxu0 %v444
    %476 = vmatpush1.msra.mxu0 %v443
    %477 = vmatprep.subr.mxu0 %v446
    %478 = vmatpush1.msra.mxu0 %v445
    %479 = vmatprep.subr.mxu0 %v448
    %480 = vmatpush1.msra.mxu0 %v447
    %481 = vmatprep.subr.mxu0 %v450
    %482 = vmatpush1.msra.mxu0 %v449
    %483 = vmatprep.subr.mxu0 %v452
    %484 = vmatpush1.msra.mxu0 %v451
    %485 = vmatprep.subr.mxu0 %v454
    %486 = vmatpush1.msra.mxu0 %v453
    %487 = vmatprep.subr.mxu0 %v456
    %488 = vmatpush1.msra.mxu0 %v455
    %489 = vmatprep.subr.mxu0 %v458
    %490 = vmatpush1.msra.mxu0 %v457
    %491 = vmatprep.subr.mxu0 %v460
    %492 = vmatpush1.msra.mxu0 %v459
    %493 = vmatprep.subr.mxu0 %v462
    %494 = vmatpush1.msra.mxu0 %v461
    %495 = vmatprep.subr.mxu0 0.0
    %496 = vmatpush1.msra.mxu0 0.0
    %497 = vmatprep.subr.mxu0 0.0
    %498 = vmatpush1.msra.mxu0 0.0
    %499 = vmatprep.subr.mxu0 0.0
    %500 = vmatpush1.msra.mxu0 0.0
    %501 = vmatprep.subr.mxu0 0.0
    %502 = vmatpush1.msra.mxu0 0.0
    %503 = vmatprep.subr.mxu0 0.0
    %504 = vmatpush1.msra.mxu0 0.0
    %505 = vmatprep.subr.mxu0 0.0
    %506 = vmatpush1.msra.mxu0 0.0
    %507 = vmatprep.subr.mxu0 0.0
    %508 = vmatpush1.msra.mxu0 0.0
    %509 = vmatprep.subr.mxu0 0.0
    %510 = vmatpush1.msra.mxu0 0.0
    %511 = vmatprep.subr.mxu0 0.0
    %512 = vmatpush1.msra.mxu0 0.0
    %513 = vmatprep.subr.mxu0 0.0
    %514 = vmatpush1.msra.mxu0 0.0
    %515 = vmatprep.subr.mxu0 0.0
    %516 = vmatpush1.msra.mxu0 0.0
    %517 = vmatprep.subr.mxu0 0.0
    %518 = vmatpush1.msra.mxu0 0.0
    %519 = vmatprep.subr.mxu0 0.0
    %520 = vmatpush1.msra.mxu0 0.0
    %521 = vmatprep.subr.mxu0 0.0
    %522 = vmatpush1.msra.mxu0 0.0
    %523 = vmatprep.subr.mxu0 0.0
    %524 = vmatpush1.msra.mxu0 0.0
    %525 = vmatprep.subr.mxu0 0.0
    %526 = vmatpush1.msra.mxu0 0.0
    %527 = vmatprep.mubr.f32.mxu0 0.0
    %528 = vmatmul.mubr.f32.gmra.mrb[0].mxu0 %v94
    %v529 = vpop.f32.mrb[0].mxu0
    %v530 = vadd.f32 0.0, %v529
    %v531 = vpop.f32.mrb[0].mxu0
    %v532 = vadd.f32 0.0, %v531
    %533 = vdwg.mxu0
    %v536 = vcombine.low %v530, %v532
    %v538 = vunpack.c.l.s4 1966171168
    %v539 = vunpack.c.0.s8 %v538
    %v540 = vlaneseq
    %v541 = vshrl.u32 %v540, 7
    %v542 = vsub.s32 %v539, %v541
    %v543 = vrot.slane %v536, %v542
    %v545 = vunpack.c.l.s4 1966171168
    %v546 = vunpack.c.0.s8 %v545
    %v547 = vlaneseq
    %v548 = vshrl.u32 %v547, 7
    %v549 = vsub.s32 %v546, %v548
    %v550 = vrot.slane %v543, %v549
    %v552 = vadd.f32 %v99, %v550
    %v553 = vstv %s27
    %v554 = vmul.f32 %v552, %v553
    %v555 = vstv %s28
    %v556 = vadd.f32 %v554, %v555
    %v557 = vlaneseq
    %vm558 = vcmp.ge.s32.totalorder %v557, 0
    %vm559 = vcmp.lt.s32.totalorder %v557, 256
    %vm560 = vmand %vm558, %vm559
    %561 = vst.msk [vmem:[#allocation4] sm:$0x3] %vm560, %v556
    // Predicated region
    $region18: #{tpu_custom_call.1} parent=1 // pred_check
      _
    $region19: #{tpu_custom_call.1} parent=1 // pred_check_branch
      %563 = sbr.rel (0) target = $region21
    $region20: #{tpu_custom_call.1} parent=1 // pred_region
      %s565 = ssub.s32 32, 32
      %566 = vsyncadd [#allocation5], %s565
      %s568 = sshll.u32 [#allocation4], 4
      %s569 = int_to_ptr.vmem [resolvable:$true] %s568
      %571 = dma.vmem_to_hbm [thread:$0]  %s569, 32, %s5, [#allocation5]
    $region21: #{tpu_custom_call.1} parent=1 // pred_fallthru
      _
    // Predicated region
    $region22: #{tpu_custom_call.1} parent=1 // pred_check
      _
    $region23: #{tpu_custom_call.1} parent=1 // pred_check_branch
      %573 = sbr.rel (0) target = $region25
    $region24: #{tpu_custom_call.1} parent=1 // pred_region
      %574 = dma.done [#allocation5], 32
    $region25: #{tpu_custom_call.1} parent=1 // pred_fallthru
      _
    %575 = vsyncpa [#allocation5], 1

</llo_original>
